<compile_context>
chip_gen: v6e
topology: v6e:2x2x1
jax: 0.10.0
libtpu: 0.0.40
codegen_flags: <defaults>
</compile_context>

<pallas_src>
import jax
import jax.numpy as jnp
from jax.experimental import pallas as pl
from jax.experimental.pallas import tpu as pltpu


_LANE = 128      # TPU lane width (last dim)
_SUBLANE = 8     # TPU sublane width (second-to-last dim, f32)


def _vmem_capacity_bytes():
    """Physical VMEM of the current part; conservative fallback (v7x = 64 MiB)."""
    try:
        info = pltpu.get_tpu_info()
        cap = getattr(info, "vmem_capacity_bytes", None)
        if cap:
            return int(cap)
    except Exception:
        pass
    return 64 << 20


def _pick_tile(dim, unit, max_tile):
    """Largest multiple of `unit` that divides `dim`, capped at `max_tile`.

    Falls back to the full dimension when `dim` is not a multiple of `unit`
    (block == full array dim is always legal).
    """
    if dim % unit != 0:
        return dim
    t = min((max_tile // unit) * unit, dim)
    while t >= unit:
        if dim % t == 0:
            return t
        t -= unit
    return dim


# ----------------------------------------------------------------------------
# Pallas kernel: one (t_c, t_hw) tile of tokens + the matching embedding tile.
# Tokens arrive at their native dtype; the promotion rides the (slack) VPU
# slot instead of a separate wrapper-level HBM pass.
# ----------------------------------------------------------------------------
def _add_pos_kernel(x_ref, e_ref, o_ref):
    o_ref[...] = x_ref[...].astype(o_ref.dtype) + e_ref[...]


def _add_position_encoding_flat(tokens_bchw, embed_chw_flat, out_dtype):
    """tokens: (B, C, H, W) native dtype; embed: (C, H*W) already in out_dtype."""
    B, C, H, W = tokens_bchw.shape
    HW = H * W
    if embed_chw_flat.shape != (C, HW):
        raise ValueError(
            f"embedding shape {embed_chw_flat.shape} incompatible with tokens {(C, HW)}"
        )

    x = tokens_bchw.reshape(B, C, HW)          # tokens stay at native dtype
    e = embed_chw_flat                          # (C, HW), already out_dtype

    x_isize = jnp.dtype(x.dtype).itemsize
    o_isize = jnp.dtype(out_dtype).itemsize

    vmem_cap = _vmem_capacity_bytes()
    budget = int(vmem_cap * 0.85)
    # Generation-aware tile caps: ~8 MiB f32 tiles on 128 MiB parts (v5e/v6e),
    # ~4 MiB on 64 MiB parts (v7x).
    max_lane = 4096 if vmem_cap >= (100 << 20) else 2048
    max_sub = 512

    t_hw = _pick_tile(HW, _LANE, max_lane)
    while True:
        t_c = _pick_tile(C, _SUBLANE, max_sub)
        # Double-buffered x, e, out tiles.
        need = 2 * t_c * t_hw * (x_isize + 2 * o_isize)
        if need <= budget or max_sub <= _SUBLANE:
            break
        max_sub //= 2

    vmem_limit = int(min(max(2 * need, 32 << 20), budget))
    vmem_limit = max(vmem_limit, min(need + (2 << 20), budget))

    c_tiles, hw_tiles = C // t_c, HW // t_hw
    grid = (c_tiles, hw_tiles, B)

    # Batch innermost + "arbitrary": the embedding tile's block index is
    # constant across consecutive steps, so Pallas keeps it resident (its HBM
    # traffic is cut by a factor of B).  If the parallel extent can't balance
    # both v7x TensorCores, shard over batch instead (the re-fetch is cheap
    # next to 2x TC throughput).
    parallel_steps = c_tiles * hw_tiles
    batch_sem = (
        "parallel"
        if (B > 1 and (parallel_steps < 2 or parallel_steps % 2 != 0))
        else "arbitrary"
    )

    # Reuse the token buffer for the output when dtypes match (lower peak HBM,
    # avoids a potential XLA copy; no semantic change).
    io_aliases = {0: 0} if x.dtype == jnp.dtype(out_dtype) else {}

    out = pl.pallas_call(
        _add_pos_kernel,
        out_shape=jax.ShapeDtypeStruct((B, C, HW), out_dtype),
        grid_spec=pltpu.PrefetchScalarGridSpec(
            num_scalar_prefetch=0,
            grid=grid,
            in_specs=[
                # Batch dim squeezed out of the kernel view (size-1 block).
                pl.BlockSpec((None, t_c, t_hw), lambda ci, ti, b: (b, ci, ti)),
                # Embedding tile: index independent of b (innermost grid axis).
                pl.BlockSpec((t_c, t_hw), lambda ci, ti, b: (ci, ti)),
            ],
            out_specs=pl.BlockSpec((None, t_c, t_hw), lambda ci, ti, b: (b, ci, ti)),
        ),
        compiler_params=pltpu.CompilerParams(
            dimension_semantics=("parallel", "parallel", batch_sem),
            vmem_limit_bytes=vmem_limit,
        ),
        input_output_aliases=io_aliases,
    )(x, e)
    return out.reshape(B, C, H, W)


def add_position_encoding(tokens_bchw, embed_bchw, out_dtype=None):
    """Convenience wrapper: tokens (B,C,H,W) + embed (1,C,H,W) -> (B,C,H,W).

    out_dtype=None matches PyTorch broadcast promotion (e.g. bf16 + f32 -> f32);
    pass out_dtype=tokens.dtype to keep bf16 output (cuts writeback traffic,
    semantic deviation from the reference).
    """
    B, C, H, W = tokens_bchw.shape
    if out_dtype is None:
        out_dtype = jnp.promote_types(tokens_bchw.dtype, embed_bchw.dtype)
    e_flat = jnp.reshape(embed_bchw, (C, H * W)).astype(out_dtype)
    return _add_position_encoding_flat(tokens_bchw, e_flat, out_dtype)


# ----------------------------------------------------------------------------
# JAX port of the module (parameter setup + resize glue in plain JAX).
# ----------------------------------------------------------------------------
class PositionEncoding:
    def __init__(self, features_per_token, base_patch_grid_hw, key=None):
        grid_h, grid_w = base_patch_grid_hw
        if key is None:
            # nn.Parameter(torch.zeros(...)) in the original.
            self.base_embedding_bchw = jnp.zeros(
                (1, features_per_token, grid_h, grid_w), dtype=jnp.float32
            )
        else:
            # Random init so the add is observable in the demo.
            self.base_embedding_bchw = jax.random.normal(
                key, (1, features_per_token, grid_h, grid_w), dtype=jnp.float32
            )
        # Resize result cached per target (H, W); flattened/cast embedding
        # cached per (source, dtype) so the per-call wrapper does no XLA work
        # on the embedding at all.
        self._resize_cache = {}
        self._flat_cache = {}

    def _scale_to_patch_grid(self, patch_grid_hw):
        hw = (int(patch_grid_hw[0]), int(patch_grid_hw[1]))
        cached = self._resize_cache.get(hw)
        if cached is not None:
            return cached
        # TODO(synk): antialiased bilinear resize is plain-JAX glue
        # (jax.image.resize); boundary handling may differ marginally from
        # torch.nn.functional.interpolate(antialias=True).
        pe_f32 = self.base_embedding_bchw.astype(jnp.float32)
        b, c, _, _ = pe_f32.shape
        resized = jax.image.resize(
            pe_f32, (b, c, hw[0], hw[1]), method="bilinear", antialias=True
        ).astype(self.base_embedding_bchw.dtype)
        self._resize_cache[hw] = resized
        return resized

    def _flat_embedding(self, embed_bchw, tag, out_dtype):
        key = (tag, jnp.dtype(out_dtype).name)
        cached = self._flat_cache.get(key)
        if cached is not None:
            return cached
        _, c, h, w = embed_bchw.shape
        flat = embed_bchw.reshape(c, h * w).astype(out_dtype)
        self._flat_cache[key] = flat
        return flat

    def __call__(self, patch_tokens_bchw):
        _, _, in_h, in_w = patch_tokens_bchw.shape
        # NOTE: replicates the reference forward() verbatim — the parameter is
        # BCHW, so `embed_h`/`embed_w` here are really (features_per_token,
        # grid_h).  Kept for identical routing semantics.
        _, embed_h, embed_w, _ = self.base_embedding_bchw.shape
        out_dtype = jnp.promote_types(
            patch_tokens_bchw.dtype, self.base_embedding_bchw.dtype
        )
        if in_h != embed_h or in_w != embed_w:
            embed = self._scale_to_patch_grid((in_h, in_w))
            e_flat = self._flat_embedding(embed, ("resized", in_h, in_w), out_dtype)
        else:
            e_flat = self._flat_embedding(self.base_embedding_bchw, ("base",), out_dtype)
        return _add_position_encoding_flat(patch_tokens_bchw, e_flat, out_dtype)


if __name__ == "__main__":
    key = jax.random.PRNGKey(0)
    k_embed, k_x1, k_x2 = jax.random.split(key, 3)

    features_per_token = 16
    base_grid_hw = (16, 16)
    posenc = PositionEncoding(features_per_token, base_grid_hw, key=k_embed)

    # Path 1: shapes "match" (per the module's own comparison) -> direct add.
    x = jax.random.normal(k_x1, (2, features_per_token, 16, 16), dtype=jnp.float32)
    ref = x + posenc.base_embedding_bchw
    out = jax.block_until_ready(posenc(x))
    assert out.shape == x.shape and out.dtype == ref.dtype
    assert jnp.allclose(out, ref, atol=1e-6), "direct-add path mismatch"

    # Path 2: different spatial size -> cached antialiased resize + Pallas add.
    x_small = jax.random.normal(k_x2, (2, features_per_token, 8, 8), dtype=jnp.float32)
    ref_small = x_small + posenc._scale_to_patch_grid((8, 8))
    out_small = jax.block_until_ready(posenc(x_small))
    assert out_small.shape == x_small.shape
    assert jnp.allclose(out_small, ref_small, atol=1e-6), "resize path mismatch"

    # Path 3: bf16 tokens -> in-kernel promotion, f32 output (PyTorch semantics).
    x_bf16 = x.astype(jnp.bfloat16)
    ref_bf16 = x_bf16.astype(jnp.float32) + posenc.base_embedding_bchw
    out_bf16 = jax.block_until_ready(posenc(x_bf16))
    assert out_bf16.dtype == jnp.float32
    assert jnp.allclose(out_bf16, ref_bf16, atol=1e-6), "bf16 promotion path mismatch"

    # Repeat call hits the resize/flatten caches and must still match.
    out_small2 = jax.block_until_ready(posenc(x_small))
    assert jnp.allclose(out_small2, ref_small, atol=1e-6), "cached-resize path mismatch"

    print("KERNEL_OK")
</pallas_src>

<mosaic_0001>
module attributes {stable_mosaic.version = 11 : i64} {
  func.func @_add_pos_kernel(%arg0: i32, %arg1: i32, %arg2: i32, %arg3: memref<1x16x256xf32, #tpu.memory_space<vmem>>, %arg4: memref<16x256xf32, #tpu.memory_space<vmem>>, %arg5: memref<1x16x256xf32, #tpu.memory_space<vmem>>) attributes {dimension_semantics = [#tpu.dimension_semantics<parallel>, #tpu.dimension_semantics<parallel>, #tpu.dimension_semantics<parallel>], iteration_bounds = array<i64: 1, 1, 2>, scalar_prefetch = 0 : i64, scratch_operands = 0 : i64, tpu.core_type = #tpu.core_type<tc>, window_params = [{transform_indices = @transform_0, window_bounds = array<i64: 1, 16, 256>}, {transform_indices = @transform_1, window_bounds = array<i64: 16, 256>}, {transform_indices = @transform_2, window_bounds = array<i64: 1, 16, 256>}]} {
    %c0 = arith.constant 0 : index
    %c0_0 = arith.constant 0 : index
    %c0_1 = arith.constant 0 : index
    %0 = vector.load %arg3[%c0, %c0_0, %c0_1] : memref<1x16x256xf32, #tpu.memory_space<vmem>>, vector<1x16x256xf32>
    %1 = vector.shape_cast %0 : vector<1x16x256xf32> to vector<16x256xf32>
    %c0_2 = arith.constant 0 : index
    %c0_3 = arith.constant 0 : index
    %2 = vector.load %arg4[%c0_2, %c0_3] : memref<16x256xf32, #tpu.memory_space<vmem>>, vector<16x256xf32>
    %3 = arith.addf %1, %2 : vector<16x256xf32>
    %c0_4 = arith.constant 0 : index
    %c0_5 = arith.constant 0 : index
    %c0_6 = arith.constant 0 : index
    %4 = vector.load %arg5[%c0_4, %c0_5, %c0_6] : memref<1x16x256xf32, #tpu.memory_space<vmem>>, vector<1x16x256xf32>
    %5 = vector.shape_cast %4 : vector<1x16x256xf32> to vector<16x256xf32>
    %6 = vector.shape_cast %3 : vector<16x256xf32> to vector<1x16x256xf32>
    tpu.vector_store %arg5[%c0_4, %c0_5, %c0_6], %6 {strides = array<i32>} : memref<1x16x256xf32, #tpu.memory_space<vmem>>, vector<1x16x256xf32>,
    return
  }
  func.func @transform_0(%arg0: i32, %arg1: i32, %arg2: i32) -> (i32, i32, i32) {
    %c0_i32 = arith.constant 0 : i32
    return %arg2, %arg0, %arg1 : i32, i32, i32
  }
  func.func @transform_1(%arg0: i32, %arg1: i32, %arg2: i32) -> (i32, i32) {
    %c0_i32 = arith.constant 0 : i32
    return %arg0, %arg1 : i32, i32
  }
  func.func @transform_2(%arg0: i32, %arg1: i32, %arg2: i32) -> (i32, i32, i32) {
    %c0_i32 = arith.constant 0 : i32
    return %arg2, %arg0, %arg1 : i32, i32, i32
  }
}

</mosaic_0001>

<llo_original>
// kernel: tpu_custom_call.1
$region0: #{tpu_custom_call.1}
  #allocation0 [shape = 'u32[]', space=smem, size = 0x4, offset = 0x4, fixed_abs, tag = 'smem constant byte address 0x4 - core index']
  #allocation1 [shape = 'u32[144,128]{1,0:T(1,128)}', space=vmem, size = 0x12000, scoped, tag = 'internal scratch']
  %s0 = inlined_call_operand.hbm [shape: f32[2,16,256], index: 0, kind: input, shape index: {}, may-alias: {0,2}]
  %s1 = inlined_call_operand.vmem [shape: f32[16,256], index: 1, kind: input, shape index: {}]
  %s2 = inlined_call_operand.hbm [shape: f32[2,16,256], index: 2, kind: output, shape index: {}, may-alias: {0,2}]
  %s3 = sld [smem:[#allocation0]]
  $region45: #{tpu_custom_call.1} parent=0
    _
  %s5 = ssub.s32 1, %s3
  %s6 = scalar_select 0, %s5, %s3
  $region1: #{tpu_custom_call.1} parent=0
    #allocation2 [shape = 'u8[32768]{0}', space=vmem, size = 0x8000, scoped, tag = 'input window, operand 0']
    #allocation3 [shape = 's32[2]{0}', space=sflag, size = 0x8, scoped, tag = 'scoped memory for tpu_custom_call.1']
    #allocation4 [shape = 's32[2]{0}', space=sflag, size = 0x8, scoped, tag = 'scoped memory for tpu_custom_call.1']
    #allocation5 [shape = 'u8[32768]{0}', space=vmem, size = 0x8000, scoped, tag = 'output window, operand 0']
    %7 = vsyncpa [#allocation3], 0
    %s8 = scalar_lea.sflag [#allocation3], 1
    %9 = vsyncpa %s8, 0
    %10 = vsyncpa [#allocation4], 0
    %s11 = scalar_lea.sflag [#allocation4], 1
    %12 = vsyncpa %s11, 0
    loop: start=0, step=1, limit=4
    $region2: #{tpu_custom_call.1} parent=1 // loop_pre_header
      _
    $region3: #{tpu_custom_call.1} parent=1 // loop_header
      %s14 = sphi 0, %s18
      %p15 = scmp.ge.s32.totalorder %s14, 4
      %s21 = sphi 0, %s40
      %s22 = sphi 0, %s36
      %s23 = sphi 0, %s32
      %s24 = sphi 0, %s21
      %s25 = sphi 0, %s22
      %s26 = sphi 0, %s23
      %s27 = sphi 0, %s24
      %s28 = sphi 0, %s25
      %s29 = sphi 0, %s26
      %s47 = sphi 0, %s49
      %s50 = sphi 0, %s47
      %s51 = sphi 0, %s50
      %s67 = sphi 0, %s51
      %s75 = sphi 0, %s77
      %s78 = sphi 0, %s75
      %s79 = sphi 0, %s78
      %s95 = sphi 0, %s79
      %s105 = sphi 0, %s107
      %s108 = sphi 0, %s105
      %s109 = sphi 0, %s108
      %s125 = sphi 0, %s109
    $region4: #{tpu_custom_call.1} parent=1 // loop_header_branch
      %17 = sbr.rel (%p15) target = $region8
    $region5: #{tpu_custom_call.1} parent=1 // loop_body
      %s19 = ssub.s32 %s14, 1
      %s20 = ssub.s32 %s14, 2
      %s30 = sadd.s32 1, %s23
      %p31 = scmp.ge.s32.totalorder %s30, 2
      %s32 = scalar_select %p31, 0, %s30
      %s33 = sadd.s32 1, %s22
      %s34 = scalar_select %p31, %s33, %s22
      %p35 = scmp.ge.s32.totalorder %s34, 1
      %s36 = scalar_select %p35, 0, %s34
      %s37 = sadd.s32 1, %s21
      %s38 = scalar_select %p35, %s37, %s21
      %p39 = scmp.ge.s32.totalorder %s38, 1
      %s40 = scalar_select %p39, 0, %s38
      %s41 = ssub.s32 %s23, %s32
      %s42 = ssub.s32 %s21, %s40
      %s43 = sor.u32 %s41, %s42
      %s44 = ssub.s32 %s22, %s36
      %s45 = sor.u32 %s43, %s44
      %p46 = scmp.eq.s32.totalorder %s45, 0
      %s48 = sadd.s32 %s47, 1
      %s49 = scalar_select %p46, %s47, %s48
      %p52 = pneg %p46
      %p53 = scmp.eq.s32.totalorder %s14, 1
      %p54 = por %p52, %p53
      %p55 = scmp.ne.s32.totalorder %s47, %s50
      %p56 = scmp.eq.s32.totalorder %s14, 0
      %p57 = por %p55, %p56
      %p58 = scmp.ne.s32.totalorder %s47, %s50
      %p59 = scmp.eq.s32.totalorder %s19, 1
      %p60 = por %p58, %p59
      %p61 = scmp.ne.s32.totalorder %s50, %s51
      %p62 = scmp.eq.s32.totalorder %s19, 0
      %p63 = por %p61, %p62
      %p64 = scmp.ne.s32.totalorder %s50, %s51
      %p65 = scmp.eq.s32.totalorder %s20, 1
      %p66 = por %p64, %p65
      %p68 = scmp.ne.s32.totalorder %s51, %s67
      %p69 = scmp.eq.s32.totalorder %s20, 0
      %p70 = por %p68, %p69
      %s71 = ssub.s32 %s21, %s40
      %s72 = ssub.s32 %s22, %s36
      %s73 = sor.u32 %s71, %s72
      %p74 = scmp.eq.s32.totalorder %s73, 0
      %s76 = sadd.s32 %s75, 1
      %s77 = scalar_select %p74, %s75, %s76
      %p80 = pneg %p74
      %p81 = scmp.eq.s32.totalorder %s14, 1
      %p82 = por %p80, %p81
      %p83 = scmp.ne.s32.totalorder %s75, %s78
      %p84 = scmp.eq.s32.totalorder %s14, 0
      %p85 = por %p83, %p84
      %p86 = scmp.ne.s32.totalorder %s75, %s78
      %p87 = scmp.eq.s32.totalorder %s19, 1
      %p88 = por %p86, %p87
      %p89 = scmp.ne.s32.totalorder %s78, %s79
      %p90 = scmp.eq.s32.totalorder %s19, 0
      %p91 = por %p89, %p90
      %p92 = scmp.ne.s32.totalorder %s78, %s79
      %p93 = scmp.eq.s32.totalorder %s20, 1
      %p94 = por %p92, %p93
      %p96 = scmp.ne.s32.totalorder %s79, %s95
      %p97 = scmp.eq.s32.totalorder %s20, 0
      %p98 = por %p96, %p97
      %s99 = ssub.s32 %s23, %s32
      %s100 = ssub.s32 %s21, %s40
      %s101 = sor.u32 %s99, %s100
      %s102 = ssub.s32 %s22, %s36
      %s103 = sor.u32 %s101, %s102
      %p104 = scmp.eq.s32.totalorder %s103, 0
      %s106 = sadd.s32 %s105, 1
      %s107 = scalar_select %p104, %s105, %s106
      %p110 = pneg %p104
      %p111 = scmp.eq.s32.totalorder %s14, 1
      %p112 = por %p110, %p111
      %p113 = scmp.ne.s32.totalorder %s105, %s108
      %p114 = scmp.eq.s32.totalorder %s14, 0
      %p115 = por %p113, %p114
      %p116 = scmp.ne.s32.totalorder %s105, %s108
      %p117 = scmp.eq.s32.totalorder %s19, 1
      %p118 = por %p116, %p117
      %p119 = scmp.ne.s32.totalorder %s108, %s109
      %p120 = scmp.eq.s32.totalorder %s19, 0
      %p121 = por %p119, %p120
      %p122 = scmp.ne.s32.totalorder %s108, %s109
      %p123 = scmp.eq.s32.totalorder %s20, 1
      %p124 = por %p122, %p123
      %p126 = scmp.ne.s32.totalorder %s109, %s125
      %p127 = scmp.eq.s32.totalorder %s20, 0
      %p128 = por %p126, %p127
      %p129 = scmp.le.s32.totalorder 1, %s14
      %p130 = scmp.lt.s32.totalorder %s14, 3
      %p131 = pnand %p129, %p130
      %p132 = pneg %p131
      // Predicated region
      $region9: #{tpu_custom_call.1} parent=5 // pred_check
        _
      $region10: #{tpu_custom_call.1} parent=5 // pred_check_branch
        %134 = sbr.rel (%p131) target = $region12
      $region11: #{tpu_custom_call.1} parent=5 // pred_region
        %s135 = ssub.s32 %s14, 1
        // Predicated region
        $region13: #{tpu_custom_call.1} parent=11 // pred_check
          %p136 = pneg %p91
        $region14: #{tpu_custom_call.1} parent=11 // pred_check_branch
          %138 = sbr.rel (%p136) target = $region16
        $region15: #{tpu_custom_call.1} parent=11 // pred_region
          %s139 = smul.u32 2, %s24
          %s140 = smul.u32 2, %s25
          %p141 = scmp.lt.s32.totalorder %s139, 1
          %s142 = scalar_select %p141, %s139, 1
          %p143 = scmp.lt.s32.totalorder %s140, 1
          %s144 = scalar_select %p143, %s140, 1
          %s145 = smul.addr %s142, 2
          %s146 = sadd.s32 %s144, %s145
          %s147 = smul.addr %s146, 8
          %s148 = scalar_lea.vmem %s1, %s147
          %s149 = smul.u32 2, %s24
          %s150 = smul.u32 2, %s25
        $region16: #{tpu_custom_call.1} parent=11 // pred_fallthru
          _
      $region12: #{tpu_custom_call.1} parent=5 // pred_fallthru
        _
      %p151 = scmp.lt.s32.totalorder %s14, 2
      // Predicated region
      $region17: #{tpu_custom_call.1} parent=5 // pred_check
        %p152 = pneg %p151
      $region18: #{tpu_custom_call.1} parent=5 // pred_check_branch
        %154 = sbr.rel (%p152) target = $region20
      $region19: #{tpu_custom_call.1} parent=5 // pred_region
        // Predicated region
        $region21: #{tpu_custom_call.1} parent=19 // pred_check
          %p155 = pneg %p57
        $region22: #{tpu_custom_call.1} parent=19 // pred_check_branch
          %157 = sbr.rel (%p155) target = $region24
        $region23: #{tpu_custom_call.1} parent=19 // pred_region
          %s158 = sand.u32 %s47, 1
          %s159 = scalar_lea.sflag [#allocation3], %s158
          %s160 = sand.u32 %s47, 1
          %s161 = smul.addr %s160, 32
          %s162 = scalar_lea.vmem [#allocation2], %s161
          %s163 = smul.u32 2, %s21
          %s164 = smul.u32 2, %s22
          %s166 = ssub.s32 512, 512
          %167 = vsyncadd %s159, %s166
          %s168 = smul.addr %s163, 2
          %s169 = sadd.s32 %s164, %s168
          %s170 = smul.addr %s23, 4
          %s171 = sadd.s32 %s169, %s170
          %s172 = smul.addr %s171, 128
          %s173 = scalar_lea.hbm %s0, %s172
          %s174 = sshll.u32 %s162, 4
          %s175 = int_to_ptr.vmem [resolvable:$true] %s174
          %180 = dma.hbm_to_vmem [thread:$0]  %s173, 512, %s175, %s159, 256, 256, 16
        $region24: #{tpu_custom_call.1} parent=19 // pred_fallthru
          _
      $region20: #{tpu_custom_call.1} parent=5 // pred_fallthru
        _
      %p181 = scmp.le.s32.totalorder 1, %s14
      %p182 = scmp.lt.s32.totalorder %s14, 3
      %p183 = pnand %p181, %p182
      %p184 = pneg %p183
      // Predicated region
      $region25: #{tpu_custom_call.1} parent=5 // pred_check
        _
      $region26: #{tpu_custom_call.1} parent=5 // pred_check_branch
        %186 = sbr.rel (%p183) target = $region28
      $region27: #{tpu_custom_call.1} parent=5 // pred_region
        %s187 = ssub.s32 %s14, 1
        %s188 = sand.u32 %s50, 1
        %s189 = scalar_lea.sflag [#allocation3], %s188
        %s190 = sand.u32 %s50, 1
        %s191 = smul.addr %s190, 32
        %s192 = scalar_lea.vmem [#allocation2], %s191
        // Predicated region
        $region29: #{tpu_custom_call.1} parent=27 // pred_check
          %p193 = pneg %p63
        $region30: #{tpu_custom_call.1} parent=27 // pred_check_branch
          %195 = sbr.rel (%p193) target = $region32
        $region31: #{tpu_custom_call.1} parent=27 // pred_region
          %196 = dma.done %s189, 512
        $region32: #{tpu_custom_call.1} parent=27 // pred_fallthru
          _
        %s197 = sand.u32 %s50, 1
        %s198 = scalar_lea.sflag [#allocation3], %s197
        %s199 = sand.u32 %s50, 1
        %s200 = smul.addr %s199, 32
        %s201 = scalar_lea.vmem [#allocation2], %s200
        %p202 = pneg %p63
        %p203 = pneg %p60
        %s204 = smul.u32 2, %s24
        %s205 = smul.u32 2, %s25
        %p206 = scmp.lt.s32.totalorder %s204, 1
        %s207 = scalar_select %p206, %s204, 1
        %p208 = scmp.lt.s32.totalorder %s205, 1
        %s209 = scalar_select %p208, %s205, 1
        %s210 = smul.addr %s207, 2
        %s211 = sadd.s32 %s209, %s210
        %s212 = smul.addr %s211, 8
        %s213 = scalar_lea.vmem %s1, %s212
        %p214 = pneg %p91
        %p215 = pneg %p88
        %p216 = pneg %p121
        %p217 = pneg %p118
        %s218 = sand.u32 %s108, 1
        %s219 = scalar_lea.sflag [#allocation4], %s218
        %s220 = sand.u32 %s108, 1
        %s221 = smul.addr %s220, 32
        %s222 = scalar_lea.vmem [#allocation5], %s221
        %s223 = smul.u32 2, %s24
        %s224 = smul.u32 2, %s25
        %s225 = smul.u32 2, %s24
        %s226 = smul.u32 2, %s25
        %p227 = scmp.lt.s32.totalorder %s225, 1
        %s228 = scalar_select %p227, %s225, 1
        %p229 = scmp.lt.s32.totalorder %s226, 1
        %s230 = scalar_select %p229, %s226, 1
        %s231 = smul.addr %s228, 2
        %s232 = sadd.s32 %s230, %s231
        %s233 = smul.addr %s232, 8
        %s234 = scalar_lea.vmem %s1, %s233
        %s235 = smul.u32 2, %s24
        %s236 = smul.u32 2, %s25
        %s237 = smul.u32 2, %s24
        %s238 = smul.u32 2, %s25
        %v239 = vld [vmem:[%s192] sm:$0xff]
        %v240 = vld [vmem:[%s192 + $0x8] sm:$0xff]
        %v241 = vld [vmem:[%s192 + $0x10] sm:$0xff]
        %v242 = vld [vmem:[%s192 + $0x18] sm:$0xff]
        %v243 = vld [vmem:[%s234] sm:$0xff]
        %v244 = vld [vmem:[%s234 + $0x8] sm:$0xff]
        %v245 = vld [vmem:[%s234 + $0x10] sm:$0xff]
        %v246 = vld [vmem:[%s234 + $0x18] sm:$0xff]
        %v247 = vadd.f32 %v239, %v243
        %v248 = vadd.f32 %v240, %v244
        %v249 = vadd.f32 %v241, %v245
        %v250 = vadd.f32 %v242, %v246
        %251 = vst [vmem:[%s222] sm:$0xff] %v247
        %252 = vst [vmem:[%s222 + $0x8] sm:$0xff] %v248
        %253 = vst [vmem:[%s222 + $0x10] sm:$0xff] %v249
        %254 = vst [vmem:[%s222 + $0x18] sm:$0xff] %v250
        %s255 = sand.u32 %s108, 1
        %s256 = scalar_lea.sflag [#allocation4], %s255
        %s257 = sand.u32 %s108, 1
        %s258 = smul.addr %s257, 32
        %s259 = scalar_lea.vmem [#allocation5], %s258
        // Predicated region
        $region33: #{tpu_custom_call.1} parent=27 // pred_check
          %p260 = pneg %p118
        $region34: #{tpu_custom_call.1} parent=27 // pred_check_branch
          %262 = sbr.rel (%p260) target = $region36
        $region35: #{tpu_custom_call.1} parent=27 // pred_region
          %s263 = smul.u32 2, %s24
          %s264 = smul.u32 2, %s25
          %s266 = ssub.s32 512, 512
          %267 = vsyncadd %s256, %s266
          %s268 = smul.addr %s263, 2
          %s269 = sadd.s32 %s264, %s268
          %s270 = smul.addr %s26, 4
          %s271 = sadd.s32 %s269, %s270
          %s272 = smul.addr %s271, 128
          %s273 = scalar_lea.hbm %s2, %s272
          %s274 = sshll.u32 %s259, 4
          %s275 = int_to_ptr.vmem [resolvable:$true] %s274
          %280 = dma.vmem_to_hbm [thread:$0]  %s275, 512, %s273, %s256, 256, 256, 16
        $region36: #{tpu_custom_call.1} parent=27 // pred_fallthru
          _
      $region28: #{tpu_custom_call.1} parent=5 // pred_fallthru
        _
      %p281 = scmp.le.s32.totalorder 2, %s14
      // Predicated region
      $region37: #{tpu_custom_call.1} parent=5 // pred_check
        %p282 = pneg %p281
      $region38: #{tpu_custom_call.1} parent=5 // pred_check_branch
        %284 = sbr.rel (%p282) target = $region40
      $region39: #{tpu_custom_call.1} parent=5 // pred_region
        %s285 = ssub.s32 %s14, 2
        // Predicated region
        $region41: #{tpu_custom_call.1} parent=39 // pred_check
          %p286 = pneg %p124
        $region42: #{tpu_custom_call.1} parent=39 // pred_check_branch
          %288 = sbr.rel (%p286) target = $region44
        $region43: #{tpu_custom_call.1} parent=39 // pred_region
          %s289 = sand.u32 %s109, 1
          %s290 = scalar_lea.sflag [#allocation4], %s289
          %s291 = sand.u32 %s109, 1
          %s292 = smul.addr %s291, 32
          %s293 = scalar_lea.vmem [#allocation5], %s292
          %294 = dma.done %s290, 512
        $region44: #{tpu_custom_call.1} parent=39 // pred_fallthru
          _
      $region40: #{tpu_custom_call.1} parent=5 // pred_fallthru
        _
    $region6: #{tpu_custom_call.1} parent=1 // loop_footer
      %s18 = sadd.s32 1, %s14
    $region7: #{tpu_custom_call.1} parent=1 // loop_footer_branch
      %13 = sbr.rel target = $region3
    $region8: #{tpu_custom_call.1} parent=1 // loop_exit
      _
    %295 = vsyncpa [#allocation3], 1
    %s296 = scalar_lea.sflag [#allocation3], 1
    %297 = vsyncpa %s296, 1
    %298 = vsyncpa [#allocation4], 1
    %s299 = scalar_lea.sflag [#allocation4], 1
    %300 = vsyncpa %s299, 1

</llo_original>
